<compile_context>
chip_gen: v6e
topology: v6e:2x2x1
jax: 0.10.0
libtpu: 0.0.40
codegen_flags: <defaults>
</compile_context>

<pallas_src>
import functools

import jax
import jax.numpy as jnp
from jax.experimental import pallas as pl
from jax.experimental.pallas import tpu as pltpu

# --- LSNNParameters defaults (norse) -----------------------------------------
TAU_SYN_INV = 1.0 / 5e-3      # 200.0
TAU_MEM_INV = 1.0 / 1e-2      # 100.0
TAU_ADAPT_INV = 1.0 / 700.0
V_LEAK = 0.0
V_TH = 1.0
V_RESET = 0.0
BETA = 1.8
DT = 0.001

_LANE = 128


# ------------------------------------------------------------------ kernel ---
def _lsnn_seq_kernel(x_ref, v_ref, i_ref, b_ref,
                     z_ref, vo_ref, io_ref, bo_ref,
                     v_sc, i_sc, b_sc):
    """One (row-tile, feature-tile) block, stepped along the T grid axis.

    v/i/b state is carried in VMEM scratch across the whole time window; per
    time step only the x tile is read from HBM and the z tile written back.
    """
    t = pl.program_id(2)

    @pl.when(t == 0)
    def _():
        v_sc[...] = v_ref[...]
        i_sc[...] = i_ref[...]
        b_sc[...] = b_ref[...]

    x = x_ref[...]
    v = v_sc[...]
    i = i_sc[...]
    b = b_sc[...]

    # Decays (constants folded at trace time; norse evaluation order kept).
    v_decayed = v + (DT * TAU_MEM_INV) * ((V_LEAK - v) + i)
    i_decayed = i + (-DT * TAU_SYN_INV) * i
    b_decayed = b + (DT * TAU_ADAPT_INV) * (V_TH - b)

    # Spike condition (single compare, reused for reset + outputs).
    spike = v_decayed - b_decayed > 0.0
    z = spike.astype(z_ref.dtype)

    z_ref[...] = z
    v_sc[...] = jnp.where(spike, jnp.asarray(V_RESET, v.dtype), v_decayed)
    i_sc[...] = i_decayed + x
    b_sc[...] = b_decayed + (TAU_ADAPT_INV * BETA) * z

    @pl.when(t == pl.num_programs(2) - 1)
    def _():
        vo_ref[...] = v_sc[...]
        io_ref[...] = i_sc[...]
        bo_ref[...] = b_sc[...]


# ------------------------------------------------------------- tile choice ---
def _sublane(itemsize):
    # dtype-aware sublane packing: 8 rows (f32), 16 (bf16), 32 (int8/fp8).
    return {4: 8, 2: 16, 1: 32}.get(itemsize, 8)


def _largest_divisor(n, unit, cap):
    """Largest d <= cap with d % unit == 0 and n % d == 0 (assumes n % unit == 0)."""
    d = max(unit, (min(n, cap) // unit) * unit)
    while d > unit and n % d != 0:
        d -= unit
    return d


def _choose_tiles(B, F, itemsize, target_tile_bytes=1 << 20):
    sub = _sublane(itemsize)
    # Feature tile: lane-dense; full extent when ragged (F % 128 != 0).
    if F % _LANE != 0:
        tf = F
    else:
        tf = _largest_divisor(F, _LANE, max(_LANE, min(F, 2048)))
    # Row tile: fill ~target_tile_bytes per array; full extent when ragged.
    if B % sub != 0:
        tb = B
    else:
        row_cap = max(sub, (target_tile_bytes // (tf * itemsize)) // sub * sub)
        tb = _largest_divisor(B, sub, min(B, row_cap))
    # v7x has 2 TensorCores: ensure >= 2 blocks when the tile is big enough to
    # matter (neutral on single-TC v5e/v6e).
    if (B // tb) * (F // tf) == 1 and tb * tf * itemsize >= (128 << 10):
        if tb % (2 * sub) == 0:
            tb //= 2
        elif tf % (2 * _LANE) == 0:
            tf //= 2
    return tb, tf


# ----------------------------------------------------------------- wrapper ---
def _lsnn_sequence_2d(xs2, v, i, b, donate_state):
    """xs2: (T, B, F); v/i/b: (B, F). Returns (zs2, v', i', b')."""
    T, B, F = xs2.shape
    dtype = xs2.dtype
    tb, tf = _choose_tiles(B, F, dtype.itemsize)
    nr, nc = B // tb, F // tf

    x_spec = pl.BlockSpec((pl.Squeezed(), tb, tf), lambda r, c, t: (t, r, c))
    s_spec = pl.BlockSpec((tb, tf), lambda r, c, t: (r, c))

    return pl.pallas_call(
        _lsnn_seq_kernel,
        out_shape=(jax.ShapeDtypeStruct((T, B, F), dtype),
                   jax.ShapeDtypeStruct((B, F), dtype),
                   jax.ShapeDtypeStruct((B, F), dtype),
                   jax.ShapeDtypeStruct((B, F), dtype)),
        grid=(nr, nc, T),
        in_specs=[x_spec, s_spec, s_spec, s_spec],
        out_specs=(x_spec, s_spec, s_spec, s_spec),
        scratch_shapes=[pltpu.VMEM((tb, tf), dtype)] * 3,
        # Alias state in->out only when the caller actually donates it.
        input_output_aliases=({1: 1, 2: 2, 3: 3} if donate_state else {}),
        compiler_params=pltpu.CompilerParams(
            dimension_semantics=("parallel", "parallel", "arbitrary"),
            vmem_limit_bytes=32 * 1024 * 1024),
    )(xs2, v, i, b)


def _default_state(B, F, dtype):
    return (jnp.full((B, F), V_LEAK, dtype=dtype),
            jnp.zeros((B, F), dtype=dtype),
            jnp.zeros((B, F), dtype=dtype))


@functools.partial(jax.jit, static_argnames=("donate_state",))
def lsnn_feed_forward_sequence(xs, state=None, *, donate_state=False):
    """Fused T-step LSNN feed-forward integration.

    xs: (T, B, *features). Returns (zs, (v, i, b)) with zs shaped like xs and
    each state array shaped (B, *features). Equivalent to scanning the single
    step cell, but keeps v/i/b resident in VMEM across all T steps.
    """
    T, B = xs.shape[0], xs.shape[1]
    feat = xs.shape[2:]
    xs2 = xs.reshape(T, B, -1)
    F = xs2.shape[2]
    if state is None:
        v, i, b = _default_state(B, F, xs2.dtype)
    else:
        v, i, b = (s.reshape(B, F) for s in state)
    zs2, v_n, i_n, b_n = _lsnn_sequence_2d(xs2, v, i, b, donate_state)
    st = (B,) + feat
    return zs2.reshape(xs.shape), (v_n.reshape(st), i_n.reshape(st),
                                   b_n.reshape(st))


@functools.partial(jax.jit, static_argnames=("donate_state",))
def lsnn_feed_forward_cell(x, state=None, *, donate_state=False):
    """One LSNN feed-forward Euler step (the PyTorch module's forward).

    x: (B, *features) input spikes/currents (trailing dims are flattened).
    state: optional (v, i, b), each shaped like x; defaults v=v_leak, i=0, b=0.
    Returns (z, (v_new, i_new, b_new)) all shaped like x.
    """
    B = x.shape[0]
    feat = x.shape[1:]
    x2 = x.reshape(1, B, -1)
    F = x2.shape[2]
    if state is None:
        v, i, b = _default_state(B, F, x2.dtype)
    else:
        v, i, b = (s.reshape(B, F) for s in state)
    zs2, v_n, i_n, b_n = _lsnn_sequence_2d(x2, v, i, b, donate_state)
    st = (B,) + feat
    return zs2[0].reshape(x.shape), (v_n.reshape(st), i_n.reshape(st),
                                     b_n.reshape(st))


# --------------------------------------------------------------- reference ---
def _reference_step(x, v, i, b):
    dv = DT * TAU_MEM_INV * ((V_LEAK - v) + i)
    v_decayed = v + dv
    di = -DT * TAU_SYN_INV * i
    i_decayed = i + di
    db = DT * TAU_ADAPT_INV * (V_TH - b)
    b_decayed = b + db
    z = (v_decayed - b_decayed > 0.0).astype(x.dtype)
    v_new = (1.0 - z) * v_decayed + z * V_RESET
    i_new = i_decayed + x
    b_new = b_decayed + z * (TAU_ADAPT_INV * BETA)
    return z, v_new, i_new, b_new


# --------------------------------------------------------------------- main --
if __name__ == "__main__":
    key = jax.random.PRNGKey(0)
    kx, kv, ki, kb, ks = jax.random.split(key, 5)

    # --- single step (module forward): batch=8, shape=(128,) -----------------
    B, F = 8, 128
    x = jax.random.bernoulli(kx, p=0.3, shape=(B, F)).astype(jnp.float32)
    v = jax.random.uniform(kv, (B, F), jnp.float32, minval=-0.5, maxval=1.5)
    i = jax.random.uniform(ki, (B, F), jnp.float32, minval=0.0, maxval=1.0)
    b = jax.random.uniform(kb, (B, F), jnp.float32, minval=0.0, maxval=0.5)

    zr, vr, ir, br = _reference_step(x, v, i, b)

    z0, s0 = lsnn_feed_forward_cell(x)                 # default-state path
    jax.block_until_ready(z0)

    z, (vn, in_, bn) = lsnn_feed_forward_cell(x, (v, i, b))
    jax.block_until_ready(z)
    assert jnp.array_equal(z, zr), "spike mismatch"
    assert jnp.allclose(vn, vr, atol=1e-6), "v mismatch"
    assert jnp.allclose(in_, ir, atol=1e-6), "i mismatch"
    assert jnp.allclose(bn, br, atol=1e-6), "b mismatch"

    # --- fused multi-step sequence: T=6 ---------------------------------------
    T = 6
    xs = jax.random.bernoulli(ks, p=0.3, shape=(T, B, F)).astype(jnp.float32)
    zs, (vT, iT, bT) = lsnn_feed_forward_sequence(xs, (v, i, b))
    jax.block_until_ready(zs)
    vv, ii, bb = v, i, b
    z_refs = []
    for t in range(T):
        zt, vv, ii, bb = _reference_step(xs[t], vv, ii, bb)
        z_refs.append(zt)
    assert jnp.array_equal(zs, jnp.stack(z_refs)), "sequence spike mismatch"
    assert jnp.allclose(vT, vv, atol=1e-5), "sequence v mismatch"
    assert jnp.allclose(iT, ii, atol=1e-5), "sequence i mismatch"
    assert jnp.allclose(bT, bb, atol=1e-5), "sequence b mismatch"

    # --- ragged shape (3, 70): no padding, full-extent blocks -----------------
    kx2, kv2, ki2, kb2 = jax.random.split(jax.random.PRNGKey(1), 4)
    x3 = jax.random.bernoulli(kx2, p=0.3, shape=(3, 70)).astype(jnp.float32)
    v3 = jax.random.uniform(kv2, (3, 70), jnp.float32, minval=-0.5, maxval=1.5)
    i3 = jax.random.uniform(ki2, (3, 70), jnp.float32, minval=0.0, maxval=1.0)
    b3 = jax.random.uniform(kb2, (3, 70), jnp.float32, minval=0.0, maxval=0.5)
    zr3, vr3, ir3, br3 = _reference_step(x3, v3, i3, b3)
    z3, (v3n, i3n, b3n) = lsnn_feed_forward_cell(x3, (v3, i3, b3))
    jax.block_until_ready(z3)
    assert jnp.array_equal(z3, zr3), "ragged spike mismatch"
    assert jnp.allclose(v3n, vr3, atol=1e-6), "ragged v mismatch"
    assert jnp.allclose(i3n, ir3, atol=1e-6), "ragged i mismatch"
    assert jnp.allclose(b3n, br3, atol=1e-6), "ragged b mismatch"

    # --- multi-dim feature shape (2, 4, 16, 16) -> flattened F=1024 -----------
    x4 = jax.random.bernoulli(jax.random.PRNGKey(2), p=0.3,
                              shape=(2, 4, 16, 16)).astype(jnp.float32)
    zr4, vr4, ir4, br4 = _reference_step(x4, jnp.full_like(x4, V_LEAK),
                                         jnp.zeros_like(x4), jnp.zeros_like(x4))
    z4, (v4, i4, b4) = lsnn_feed_forward_cell(x4)
    jax.block_until_ready(z4)
    assert jnp.array_equal(z4, zr4), "4d spike mismatch"
    assert jnp.allclose(v4, vr4, atol=1e-6), "4d v mismatch"
    assert jnp.allclose(i4, ir4, atol=1e-6), "4d i mismatch"
    assert jnp.allclose(b4, br4, atol=1e-6), "4d b mismatch"

    print("KERNEL_OK")
</pallas_src>

<mosaic_0001>
module attributes {stable_mosaic.version = 11 : i64} {
  func.func @_lsnn_seq_kernel(%arg0: i32, %arg1: i32, %arg2: i32, %arg3: memref<1x8x128xf32, #tpu.memory_space<vmem>>, %arg4: memref<8x128xf32, #tpu.memory_space<vmem>>, %arg5: memref<8x128xf32, #tpu.memory_space<vmem>>, %arg6: memref<8x128xf32, #tpu.memory_space<vmem>>, %arg7: memref<1x8x128xf32, #tpu.memory_space<vmem>>, %arg8: memref<8x128xf32, #tpu.memory_space<vmem>>, %arg9: memref<8x128xf32, #tpu.memory_space<vmem>>, %arg10: memref<8x128xf32, #tpu.memory_space<vmem>>, %arg11: memref<8x128xf32, #tpu.memory_space<vmem>>, %arg12: memref<8x128xf32, #tpu.memory_space<vmem>>, %arg13: memref<8x128xf32, #tpu.memory_space<vmem>>) attributes {dimension_semantics = [#tpu.dimension_semantics<parallel>, #tpu.dimension_semantics<parallel>, #tpu.dimension_semantics<arbitrary>], iteration_bounds = array<i64: 1, 1, 1>, scalar_prefetch = 0 : i64, scratch_operands = 3 : i64, tpu.core_type = #tpu.core_type<tc>, window_params = [{transform_indices = @transform_0, window_bounds = array<i64: 1, 8, 128>}, {transform_indices = @transform_1, window_bounds = array<i64: 8, 128>}, {transform_indices = @transform_2, window_bounds = array<i64: 8, 128>}, {transform_indices = @transform_3, window_bounds = array<i64: 8, 128>}, {transform_indices = @transform_4, window_bounds = array<i64: 1, 8, 128>}, {transform_indices = @transform_5, window_bounds = array<i64: 8, 128>}, {transform_indices = @transform_6, window_bounds = array<i64: 8, 128>}, {transform_indices = @transform_7, window_bounds = array<i64: 8, 128>}]} {
    %c0_i32 = arith.constant 0 : i32
    %0 = arith.cmpi eq, %arg2, %c0_i32 : i32
    %1 = arith.extui %0 : i1 to i32
    %c0_i32_0 = arith.constant 0 : i32
    %2 = arith.cmpi ne, %1, %c0_i32_0 : i32
    scf.if %2 {
      %c0_27 = arith.constant 0 : index
      %c0_28 = arith.constant 0 : index
      %42 = vector.load %arg4[%c0_27, %c0_28] : memref<8x128xf32, #tpu.memory_space<vmem>>, vector<8x128xf32>
      %c0_29 = arith.constant 0 : index
      %c0_30 = arith.constant 0 : index
      %43 = vector.load %arg11[%c0_29, %c0_30] : memref<8x128xf32, #tpu.memory_space<vmem>>, vector<8x128xf32>
      tpu.vector_store %arg11[%c0_29, %c0_30], %42 {strides = array<i32>} : memref<8x128xf32, #tpu.memory_space<vmem>>, vector<8x128xf32>,
      %c0_31 = arith.constant 0 : index
      %c0_32 = arith.constant 0 : index
      %44 = vector.load %arg5[%c0_31, %c0_32] : memref<8x128xf32, #tpu.memory_space<vmem>>, vector<8x128xf32>
      %c0_33 = arith.constant 0 : index
      %c0_34 = arith.constant 0 : index
      %45 = vector.load %arg12[%c0_33, %c0_34] : memref<8x128xf32, #tpu.memory_space<vmem>>, vector<8x128xf32>
      tpu.vector_store %arg12[%c0_33, %c0_34], %44 {strides = array<i32>} : memref<8x128xf32, #tpu.memory_space<vmem>>, vector<8x128xf32>,
      %c0_35 = arith.constant 0 : index
      %c0_36 = arith.constant 0 : index
      %46 = vector.load %arg6[%c0_35, %c0_36] : memref<8x128xf32, #tpu.memory_space<vmem>>, vector<8x128xf32>
      %c0_37 = arith.constant 0 : index
      %c0_38 = arith.constant 0 : index
      %47 = vector.load %arg13[%c0_37, %c0_38] : memref<8x128xf32, #tpu.memory_space<vmem>>, vector<8x128xf32>
      tpu.vector_store %arg13[%c0_37, %c0_38], %46 {strides = array<i32>} : memref<8x128xf32, #tpu.memory_space<vmem>>, vector<8x128xf32>,
    } else {
    }
    %c0 = arith.constant 0 : index
    %c0_1 = arith.constant 0 : index
    %c0_2 = arith.constant 0 : index
    %3 = vector.load %arg3[%c0, %c0_1, %c0_2] : memref<1x8x128xf32, #tpu.memory_space<vmem>>, vector<1x8x128xf32>
    %4 = vector.shape_cast %3 : vector<1x8x128xf32> to vector<8x128xf32>
    %c0_3 = arith.constant 0 : index
    %c0_4 = arith.constant 0 : index
    %5 = vector.load %arg11[%c0_3, %c0_4] : memref<8x128xf32, #tpu.memory_space<vmem>>, vector<8x128xf32>
    %c0_5 = arith.constant 0 : index
    %c0_6 = arith.constant 0 : index
    %6 = vector.load %arg12[%c0_5, %c0_6] : memref<8x128xf32, #tpu.memory_space<vmem>>, vector<8x128xf32>
    %c0_7 = arith.constant 0 : index
    %c0_8 = arith.constant 0 : index
    %7 = vector.load %arg13[%c0_7, %c0_8] : memref<8x128xf32, #tpu.memory_space<vmem>>, vector<8x128xf32>
    %cst = arith.constant 0.000000e+00 : f32
    %8 = vector.broadcast %cst : f32 to vector<8x128xf32>
    %9 = arith.subf %8, %5 : vector<8x128xf32>
    %10 = arith.addf %9, %6 : vector<8x128xf32>
    %cst_9 = arith.constant 1.000000e-01 : f32
    %11 = vector.broadcast %cst_9 : f32 to vector<8x128xf32>
    %12 = arith.mulf %11, %10 : vector<8x128xf32>
    %13 = arith.addf %5, %12 : vector<8x128xf32>
    %cst_10 = arith.constant -2.000000e-01 : f32
    %14 = vector.broadcast %cst_10 : f32 to vector<8x128xf32>
    %15 = arith.mulf %14, %6 : vector<8x128xf32>
    %16 = arith.addf %6, %15 : vector<8x128xf32>
    %cst_11 = arith.constant 1.000000e+00 : f32
    %17 = vector.broadcast %cst_11 : f32 to vector<8x128xf32>
    %18 = arith.subf %17, %7 : vector<8x128xf32>
    %cst_12 = arith.constant 1.42857141E-6 : f32
    %19 = vector.broadcast %cst_12 : f32 to vector<8x128xf32>
    %20 = arith.mulf %19, %18 : vector<8x128xf32>
    %21 = arith.addf %7, %20 : vector<8x128xf32>
    %22 = arith.subf %13, %21 : vector<8x128xf32>
    %cst_13 = arith.constant 0.000000e+00 : f32
    %23 = vector.broadcast %cst_13 : f32 to vector<8x128xf32>
    %24 = arith.cmpf ogt, %22, %23 : vector<8x128xf32>
    %25 = arith.extui %24 : vector<8x128xi1> to vector<8x128xi32>
    %26 = arith.sitofp %25 : vector<8x128xi32> to vector<8x128xf32>
    %c0_14 = arith.constant 0 : index
    %c0_15 = arith.constant 0 : index
    %c0_16 = arith.constant 0 : index
    %27 = vector.load %arg7[%c0_14, %c0_15, %c0_16] : memref<1x8x128xf32, #tpu.memory_space<vmem>>, vector<1x8x128xf32>
    %28 = vector.shape_cast %27 : vector<1x8x128xf32> to vector<8x128xf32>
    %29 = vector.shape_cast %26 : vector<8x128xf32> to vector<1x8x128xf32>
    tpu.vector_store %arg7[%c0_14, %c0_15, %c0_16], %29 {strides = array<i32>} : memref<1x8x128xf32, #tpu.memory_space<vmem>>, vector<1x8x128xf32>,
    %cst_17 = arith.constant 0.000000e+00 : f32
    %30 = vector.broadcast %cst_17 : f32 to vector<8x128xf32>
    %31 = arith.select %24, %30, %13 : vector<8x128xi1>, vector<8x128xf32>
    %c0_18 = arith.constant 0 : index
    %c0_19 = arith.constant 0 : index
    %32 = vector.load %arg11[%c0_18, %c0_19] : memref<8x128xf32, #tpu.memory_space<vmem>>, vector<8x128xf32>
    tpu.vector_store %arg11[%c0_18, %c0_19], %31 {strides = array<i32>} : memref<8x128xf32, #tpu.memory_space<vmem>>, vector<8x128xf32>,
    %33 = arith.addf %16, %4 : vector<8x128xf32>
    %c0_20 = arith.constant 0 : index
    %c0_21 = arith.constant 0 : index
    %34 = vector.load %arg12[%c0_20, %c0_21] : memref<8x128xf32, #tpu.memory_space<vmem>>, vector<8x128xf32>
    tpu.vector_store %arg12[%c0_20, %c0_21], %33 {strides = array<i32>} : memref<8x128xf32, #tpu.memory_space<vmem>>, vector<8x128xf32>,
    %cst_22 = arith.constant 0.00257142866 : f32
    %35 = vector.broadcast %cst_22 : f32 to vector<8x128xf32>
    %36 = arith.mulf %35, %26 : vector<8x128xf32>
    %37 = arith.addf %21, %36 : vector<8x128xf32>
    %c0_23 = arith.constant 0 : index
    %c0_24 = arith.constant 0 : index
    %38 = vector.load %arg13[%c0_23, %c0_24] : memref<8x128xf32, #tpu.memory_space<vmem>>, vector<8x128xf32>
    tpu.vector_store %arg13[%c0_23, %c0_24], %37 {strides = array<i32>} : memref<8x128xf32, #tpu.memory_space<vmem>>, vector<8x128xf32>,
    %c0_i32_25 = arith.constant 0 : i32
    %39 = arith.cmpi eq, %arg2, %c0_i32_25 : i32
    %40 = arith.extui %39 : i1 to i32
    %c0_i32_26 = arith.constant 0 : i32
    %41 = arith.cmpi ne, %40, %c0_i32_26 : i32
    scf.if %41 {
      %c0_27 = arith.constant 0 : index
      %c0_28 = arith.constant 0 : index
      %42 = vector.load %arg11[%c0_27, %c0_28] : memref<8x128xf32, #tpu.memory_space<vmem>>, vector<8x128xf32>
      %c0_29 = arith.constant 0 : index
      %c0_30 = arith.constant 0 : index
      %43 = vector.load %arg8[%c0_29, %c0_30] : memref<8x128xf32, #tpu.memory_space<vmem>>, vector<8x128xf32>
      tpu.vector_store %arg8[%c0_29, %c0_30], %42 {strides = array<i32>} : memref<8x128xf32, #tpu.memory_space<vmem>>, vector<8x128xf32>,
      %c0_31 = arith.constant 0 : index
      %c0_32 = arith.constant 0 : index
      %44 = vector.load %arg12[%c0_31, %c0_32] : memref<8x128xf32, #tpu.memory_space<vmem>>, vector<8x128xf32>
      %c0_33 = arith.constant 0 : index
      %c0_34 = arith.constant 0 : index
      %45 = vector.load %arg9[%c0_33, %c0_34] : memref<8x128xf32, #tpu.memory_space<vmem>>, vector<8x128xf32>
      tpu.vector_store %arg9[%c0_33, %c0_34], %44 {strides = array<i32>} : memref<8x128xf32, #tpu.memory_space<vmem>>, vector<8x128xf32>,
      %c0_35 = arith.constant 0 : index
      %c0_36 = arith.constant 0 : index
      %46 = vector.load %arg13[%c0_35, %c0_36] : memref<8x128xf32, #tpu.memory_space<vmem>>, vector<8x128xf32>
      %c0_37 = arith.constant 0 : index
      %c0_38 = arith.constant 0 : index
      %47 = vector.load %arg10[%c0_37, %c0_38] : memref<8x128xf32, #tpu.memory_space<vmem>>, vector<8x128xf32>
      tpu.vector_store %arg10[%c0_37, %c0_38], %46 {strides = array<i32>} : memref<8x128xf32, #tpu.memory_space<vmem>>, vector<8x128xf32>,
    } else {
    }
    return
  }
  func.func @transform_0(%arg0: i32, %arg1: i32, %arg2: i32) -> (i32, i32, i32) {
    %c0_i32 = arith.constant 0 : i32
    return %arg2, %arg0, %arg1 : i32, i32, i32
  }
  func.func @transform_1(%arg0: i32, %arg1: i32, %arg2: i32) -> (i32, i32) {
    %c0_i32 = arith.constant 0 : i32
    return %arg0, %arg1 : i32, i32
  }
  func.func @transform_2(%arg0: i32, %arg1: i32, %arg2: i32) -> (i32, i32) {
    %c0_i32 = arith.constant 0 : i32
    return %arg0, %arg1 : i32, i32
  }
  func.func @transform_3(%arg0: i32, %arg1: i32, %arg2: i32) -> (i32, i32) {
    %c0_i32 = arith.constant 0 : i32
    return %arg0, %arg1 : i32, i32
  }
  func.func @transform_4(%arg0: i32, %arg1: i32, %arg2: i32) -> (i32, i32, i32) {
    %c0_i32 = arith.constant 0 : i32
    return %arg2, %arg0, %arg1 : i32, i32, i32
  }
  func.func @transform_5(%arg0: i32, %arg1: i32, %arg2: i32) -> (i32, i32) {
    %c0_i32 = arith.constant 0 : i32
    return %arg0, %arg1 : i32, i32
  }
  func.func @transform_6(%arg0: i32, %arg1: i32, %arg2: i32) -> (i32, i32) {
    %c0_i32 = arith.constant 0 : i32
    return %arg0, %arg1 : i32, i32
  }
  func.func @transform_7(%arg0: i32, %arg1: i32, %arg2: i32) -> (i32, i32) {
    %c0_i32 = arith.constant 0 : i32
    return %arg0, %arg1 : i32, i32
  }
}

</mosaic_0001>

<llo_original>
// kernel: lsnn_feed_forward_cell.1
$region0: #{lsnn_feed_forward_cell.1}
  #allocation0 [shape = 'u32[]', space=smem, size = 0x4, offset = 0x4, fixed_abs, tag = 'smem constant byte address 0x4 - core index']
  #allocation1 [shape = 'u32[144,128]{1,0:T(1,128)}', space=vmem, size = 0x12000, scoped, tag = 'internal scratch']
  #allocation2 [shape = 'f32[8,128]{1,0:T(8,128)}', space=vmem, size = 0x1000, scoped, tag = 'scratch operand']
  #allocation3 [shape = 'f32[8,128]{1,0:T(8,128)}', space=vmem, size = 0x1000, scoped, tag = 'scratch operand']
  #allocation4 [shape = 'f32[8,128]{1,0:T(8,128)}', space=vmem, size = 0x1000, scoped, tag = 'scratch operand']
  %s0 = inlined_call_operand.vmem [shape: f32[1,8,128], index: 0, kind: input, shape index: {}]
  %s1 = inlined_call_operand.vmem [shape: f32[8,128], index: 1, kind: input, shape index: {}, may-alias: {1,2,3}]
  %s2 = inlined_call_operand.vmem [shape: f32[8,128], index: 2, kind: input, shape index: {}, may-alias: {1,2,3}]
  %s3 = inlined_call_operand.vmem [shape: f32[8,128], index: 3, kind: input, shape index: {}, may-alias: {1,2,3}]
  %s4 = inlined_call_operand.hbm [shape: f32[1,8,128], index: 4, kind: output, shape index: {0}]
  %s5 = inlined_call_operand.hbm [shape: f32[8,128], index: 5, kind: output, shape index: {1}]
  %s6 = inlined_call_operand.hbm [shape: f32[8,128], index: 6, kind: output, shape index: {2}]
  %s7 = inlined_call_operand.hbm [shape: f32[8,128], index: 7, kind: output, shape index: {3}]
  %8 = xla_tuple %s4, %s5, %s6, %s7
  %s9 = sld [smem:[#allocation0]]
  $region58: #{lsnn_feed_forward_cell.1} parent=0
    _
  %s11 = ssub.s32 1, %s9
  %s12 = scalar_select 0, %s11, %s9
  $region1: #{lsnn_feed_forward_cell.1} parent=0
    #allocation5 [shape = 'u8[4096]{0}', space=vmem, size = 0x1000, scoped, tag = 'output window, operand 0, single buffered']
    #allocation6 [shape = 's32[1]{0}', space=sflag, size = 0x4, scoped, tag = 'scoped memory for lsnn_feed_forward_cell.1']
    #allocation7 [shape = 'u8[4096]{0}', space=vmem, size = 0x1000, scoped, tag = 'output window, operand 1, single buffered']
    #allocation8 [shape = 's32[1]{0}', space=sflag, size = 0x4, scoped, tag = 'scoped memory for lsnn_feed_forward_cell.1']
    #allocation9 [shape = 'u8[4096]{0}', space=vmem, size = 0x1000, scoped, tag = 'output window, operand 2, single buffered']
    #allocation10 [shape = 'u8[4096]{0}', space=vmem, size = 0x1000, scoped, tag = 'output window, operand 3, single buffered']
    #allocation11 [shape = 's32[1]{0}', space=sflag, size = 0x4, scoped, tag = 'scoped memory for lsnn_feed_forward_cell.1']
    %13 = vsyncpa [#allocation6], 0
    %14 = vsyncpa [#allocation8], 0
    %15 = vsyncpa [#allocation11], 0
    // Predicated region
    $region2: #{lsnn_feed_forward_cell.1} parent=1 // pred_check
      _
    $region3: #{lsnn_feed_forward_cell.1} parent=1 // pred_check_branch
      %17 = sbr.rel (0) target = $region5
    $region4: #{lsnn_feed_forward_cell.1} parent=1 // pred_region
      _
    $region5: #{lsnn_feed_forward_cell.1} parent=1 // pred_fallthru
      _
    // Predicated region
    $region6: #{lsnn_feed_forward_cell.1} parent=1 // pred_check
      _
    $region7: #{lsnn_feed_forward_cell.1} parent=1 // pred_check_branch
      %19 = sbr.rel (0) target = $region9
    $region8: #{lsnn_feed_forward_cell.1} parent=1 // pred_region
      _
    $region9: #{lsnn_feed_forward_cell.1} parent=1 // pred_fallthru
      _
    // Predicated region
    $region10: #{lsnn_feed_forward_cell.1} parent=1 // pred_check
      _
    $region11: #{lsnn_feed_forward_cell.1} parent=1 // pred_check_branch
      %21 = sbr.rel (0) target = $region13
    $region12: #{lsnn_feed_forward_cell.1} parent=1 // pred_region
      _
    $region13: #{lsnn_feed_forward_cell.1} parent=1 // pred_fallthru
      _
    // Predicated region
    $region14: #{lsnn_feed_forward_cell.1} parent=1 // pred_check
      _
    $region15: #{lsnn_feed_forward_cell.1} parent=1 // pred_check_branch
      %23 = sbr.rel (0) target = $region17
    $region16: #{lsnn_feed_forward_cell.1} parent=1 // pred_region
      _
    $region17: #{lsnn_feed_forward_cell.1} parent=1 // pred_fallthru
      _
    %p24 = scmp.eq.s32.totalorder 0, 0
    // Predicated region
    $region18: #{lsnn_feed_forward_cell.1} parent=1 // pred_check
      %p25 = pneg %p24
    $region19: #{lsnn_feed_forward_cell.1} parent=1 // pred_check_branch
      %27 = sbr.rel (%p25) target = $region21
    $region20: #{lsnn_feed_forward_cell.1} parent=1 // pred_region
      %v28 = vld [vmem:[%s1] sm:$0xff]
      %29 = vst [vmem:[#allocation2] sm:$0xff] %v28
      %v30 = vld [vmem:[%s2] sm:$0xff]
      %31 = vst [vmem:[#allocation3] sm:$0xff] %v30
      %v32 = vld [vmem:[%s3] sm:$0xff]
      %33 = vst [vmem:[#allocation4] sm:$0xff] %v32
    $region21: #{lsnn_feed_forward_cell.1} parent=1 // pred_fallthru
      _
    %v34 = vld [vmem:[%s0] sm:$0xff]
    %v35 = vld [vmem:[#allocation2] sm:$0xff]
    %v36 = vld [vmem:[#allocation3] sm:$0xff]
    %v37 = vld [vmem:[#allocation4] sm:$0xff]
    %v38 = vsub.f32 0.0, %v35
    %v39 = vadd.f32 %v38, %v36
    %v40 = vmul.f32 %v39, 0.1
    %v41 = vadd.f32 %v35, %v40
    %v42 = vmul.f32 %v36, -0.2
    %v43 = vadd.f32 %v36, %v42
    %v44 = vsub.f32 1.0, %v37
    %v45 = vmul.f32 %v44, 1.4285714e-06
    %v46 = vadd.f32 %v37, %v45
    %v47 = vsub.f32 %v41, %v46
    %vm48 = vcmp.gt.f32.partialorder %v47, 0.0
    %v49 = vsel %vm48, 1, 0
    %v50 = vcvt.s32.f32 %v49
    %51 = vst [vmem:[#allocation5] sm:$0xff] %v50
    %v52 = vsel %vm48, 0.0, %v41
    %53 = vst [vmem:[#allocation2] sm:$0xff] %v52
    %v54 = vadd.f32 %v43, %v34
    %55 = vst [vmem:[#allocation3] sm:$0xff] %v54
    %v56 = vmul.f32 %v50, 0.0025714287
    %v57 = vadd.f32 %v46, %v56
    %58 = vst [vmem:[#allocation4] sm:$0xff] %v57
    // Predicated region
    $region22: #{lsnn_feed_forward_cell.1} parent=1 // pred_check
      %p59 = pneg %p24
    $region23: #{lsnn_feed_forward_cell.1} parent=1 // pred_check_branch
      %61 = sbr.rel (%p59) target = $region25
    $region24: #{lsnn_feed_forward_cell.1} parent=1 // pred_region
      %v62 = vld [vmem:[#allocation2] sm:$0xff]
      %63 = vst [vmem:[#allocation7] sm:$0xff] %v62
      %v64 = vld [vmem:[#allocation3] sm:$0xff]
      %65 = vst [vmem:[#allocation9] sm:$0xff] %v64
      %v66 = vld [vmem:[#allocation4] sm:$0xff]
      %67 = vst [vmem:[#allocation10] sm:$0xff] %v66
    $region25: #{lsnn_feed_forward_cell.1} parent=1 // pred_fallthru
      _
    // Predicated region
    $region26: #{lsnn_feed_forward_cell.1} parent=1 // pred_check
      _
    $region27: #{lsnn_feed_forward_cell.1} parent=1 // pred_check_branch
      %69 = sbr.rel (0) target = $region29
    $region28: #{lsnn_feed_forward_cell.1} parent=1 // pred_region
      %s71 = ssub.s32 128, 128
      %72 = vsyncadd [#allocation6], %s71
      %s74 = sshll.u32 [#allocation5], 4
      %s75 = int_to_ptr.vmem [resolvable:$true] %s74
      %77 = dma.vmem_to_hbm [thread:$0]  %s75, 128, %s4, [#allocation6]
    $region29: #{lsnn_feed_forward_cell.1} parent=1 // pred_fallthru
      _
    // Predicated region
    $region30: #{lsnn_feed_forward_cell.1} parent=1 // pred_check
      _
    $region31: #{lsnn_feed_forward_cell.1} parent=1 // pred_check_branch
      %79 = sbr.rel (0) target = $region33
    $region32: #{lsnn_feed_forward_cell.1} parent=1 // pred_region
      %s81 = ssub.s32 128, 128
      %82 = vsyncadd [#allocation8], %s81
      %s84 = sshll.u32 [#allocation7], 4
      %s85 = int_to_ptr.vmem [resolvable:$true] %s84
      %87 = dma.vmem_to_hbm [thread:$0]  %s85, 128, %s5, [#allocation8]
    $region33: #{lsnn_feed_forward_cell.1} parent=1 // pred_fallthru
      _
    // Predicated region
    $region34: #{lsnn_feed_forward_cell.1} parent=1 // pred_check
      _
    $region35: #{lsnn_feed_forward_cell.1} parent=1 // pred_check_branch
      %89 = sbr.rel (0) target = $region37
    $region36: #{lsnn_feed_forward_cell.1} parent=1 // pred_region
      %s91 = ssub.s32 128, 128
      %92 = vsyncadd [#allocation8], %s91
      %s94 = sshll.u32 [#allocation9], 4
      %s95 = int_to_ptr.vmem [resolvable:$true] %s94
      %97 = dma.vmem_to_hbm [thread:$0]  %s95, 128, %s6, [#allocation8]
    $region37: #{lsnn_feed_forward_cell.1} parent=1 // pred_fallthru
      _
    // Predicated region
    $region38: #{lsnn_feed_forward_cell.1} parent=1 // pred_check
      _
    $region39: #{lsnn_feed_forward_cell.1} parent=1 // pred_check_branch
      %99 = sbr.rel (0) target = $region41
    $region40: #{lsnn_feed_forward_cell.1} parent=1 // pred_region
      %s101 = ssub.s32 128, 128
      %102 = vsyncadd [#allocation11], %s101
      %s104 = sshll.u32 [#allocation10], 4
      %s105 = int_to_ptr.vmem [resolvable:$true] %s104
      %107 = dma.vmem_to_hbm [thread:$0]  %s105, 128, %s7, [#allocation11]
    $region41: #{lsnn_feed_forward_cell.1} parent=1 // pred_fallthru
      _
    // Predicated region
    $region42: #{lsnn_feed_forward_cell.1} parent=1 // pred_check
      _
    $region43: #{lsnn_feed_forward_cell.1} parent=1 // pred_check_branch
      %109 = sbr.rel (0) target = $region45
    $region44: #{lsnn_feed_forward_cell.1} parent=1 // pred_region
      %110 = dma.done [#allocation6], 128
    $region45: #{lsnn_feed_forward_cell.1} parent=1 // pred_fallthru
      _
    // Predicated region
    $region46: #{lsnn_feed_forward_cell.1} parent=1 // pred_check
      _
    $region47: #{lsnn_feed_forward_cell.1} parent=1 // pred_check_branch
      %112 = sbr.rel (0) target = $region49
    $region48: #{lsnn_feed_forward_cell.1} parent=1 // pred_region
      %113 = dma.done [#allocation8], 128
    $region49: #{lsnn_feed_forward_cell.1} parent=1 // pred_fallthru
      _
    // Predicated region
    $region50: #{lsnn_feed_forward_cell.1} parent=1 // pred_check
      _
    $region51: #{lsnn_feed_forward_cell.1} parent=1 // pred_check_branch
      %115 = sbr.rel (0) target = $region53
    $region52: #{lsnn_feed_forward_cell.1} parent=1 // pred_region
      %116 = dma.done [#allocation8], 128
    $region53: #{lsnn_feed_forward_cell.1} parent=1 // pred_fallthru
      _
    // Predicated region
    $region54: #{lsnn_feed_forward_cell.1} parent=1 // pred_check
      _
    $region55: #{lsnn_feed_forward_cell.1} parent=1 // pred_check_branch
      %118 = sbr.rel (0) target = $region57
    $region56: #{lsnn_feed_forward_cell.1} parent=1 // pred_region
      %119 = dma.done [#allocation11], 128
    $region57: #{lsnn_feed_forward_cell.1} parent=1 // pred_fallthru
      _
    %120 = vsyncpa [#allocation6], 1
    %121 = vsyncpa [#allocation8], 1
    %122 = vsyncpa [#allocation11], 1

</llo_original>
